<compile_context>
chip_gen: v7x
topology: tpu7x:2x2x1
jax: 0.10.0
libtpu: 0.0.40
codegen_flags: <defaults>
</compile_context>

<pallas_src>
import math

import jax
import jax.numpy as jnp
import numpy as np
from jax.experimental import pallas as pl
from jax.experimental.pallas import tpu as pltpu

_BN_EPS = 1e-5


def _round_up(x, m):
    return (x + m - 1) // m * m


def _bn_relu(z, gamma, beta, batch):
    # Training-mode BatchNorm1d (biased batch variance), two-pass stats for
    # numerical robustness; gamma * rsqrt(var+eps) folded into a single scale.
    inv_b = 1.0 / batch
    mean = jnp.sum(z, axis=0, keepdims=True) * inv_b
    d = z - mean
    var = jnp.sum(d * d, axis=0, keepdims=True) * inv_b
    scale = gamma * jax.lax.rsqrt(var + _BN_EPS)
    return jnp.maximum(d * scale + beta, 0.0)


def _make_kernel(meta):
    batch = meta["batch"]
    d_total = meta["d_total"]
    dim = meta["dim"]
    loc_col = meta["loc_col"]
    emb_dim = meta["emb_dim"]
    emb_rows = meta["emb_rows"]
    h1_pad = meta["h1_pad"]
    n_extra = meta["n_extra"]
    d_out = meta["d_out"]
    out_pad = meta["out_pad"]
    off_we = meta["off_we"]
    off_b1 = meta["off_b1"]

    def kernel(x_ref, emb_ref, p1_ref, *rest):
        if n_extra:
            ph_ref, p3_ref, o_ref = rest
        else:
            p3_ref, o_ref = rest

        f32 = jnp.float32
        bf16 = jnp.bfloat16

        xv = x_ref[...]                                              # [B, D_total] f32

        # ---- in-kernel feature assembly (was JAX-side glue) ----
        # y = x[:, dim]; loc = (x with col `dim` dropped)[:, -1].  Both are
        # integers stored as floats -> exact full-lane iota-compare extraction.
        lane = jax.lax.broadcasted_iota(jnp.int32, (batch, d_total), 1).astype(f32)
        y_f = jnp.sum(jnp.where(lane == float(dim), xv, 0.0), axis=1, keepdims=True)
        loc_f = jnp.sum(jnp.where(lane == float(loc_col), xv, 0.0), axis=1, keepdims=True)

        # Embedding gather fused as a one-hot (bf16) matmul against the table.
        row = jax.lax.broadcasted_iota(jnp.int32, (batch, emb_rows), 1).astype(f32)
        onehot = (row == loc_f).astype(bf16)
        emb_g = jnp.dot(onehot, emb_ref[...].astype(bf16),
                        preferred_element_type=f32)                  # [B, emb_dim]

        # ---- linear1 + BN1 + relu ----
        # Column drop / concat folded into the weight layout: the label and
        # location columns of x hit all-zero weight rows, so x is used whole.
        z = (jnp.dot(xv.astype(bf16), p1_ref[0:d_total, :].astype(bf16),
                     preferred_element_type=f32)
             + jnp.dot(emb_g.astype(bf16),
                       p1_ref[off_we:off_we + emb_dim, :].astype(bf16),
                       preferred_element_type=f32)
             + p1_ref[off_b1:off_b1 + 1, :])
        h = _bn_relu(z, p1_ref[off_b1 + 1:off_b1 + 2, :],
                     p1_ref[off_b1 + 2:off_b1 + 3, :], batch)

        # ---- extra hidden layers ----
        for i in range(n_extra):
            blk = ph_ref[i]                                          # [h1_pad+8, h1_pad]
            z = (jnp.dot(h.astype(bf16), blk[0:h1_pad, :].astype(bf16),
                         preferred_element_type=f32)
                 + blk[h1_pad:h1_pad + 1, :])
            h = _bn_relu(z, blk[h1_pad + 1:h1_pad + 2, :],
                         blk[h1_pad + 2:h1_pad + 3, :], batch)

        # ---- output head (lane-padded to out_pad) ----
        logits = (jnp.dot(h.astype(bf16), p3_ref[0:h1_pad, :].astype(bf16),
                          preferred_element_type=f32)
                  + p3_ref[h1_pad:h1_pad + 1, :])                    # [B, out_pad]

        cls = jax.lax.broadcasted_iota(jnp.int32, (batch, out_pad), 1)
        logits = jnp.where(cls < d_out, logits, jnp.float32(-1e30))  # mask pad lanes

        m = jnp.max(logits, axis=1, keepdims=True)
        e = jnp.exp(logits - m)
        s = jnp.sum(e, axis=1, keepdims=True)
        probs = e * pl.reciprocal(s)                                 # padded lanes -> 0
        log_p = logits - (m + jnp.log(s))

        # CrossEntropyLoss(logits, y) = mean_i( -log_softmax(logits)[i, y_i] ).
        # Precondition (as in PyTorch): labels are integers in [0, d_out).
        cls_f = cls.astype(f32)
        picked = jnp.sum(jnp.where(cls_f == y_f, log_p, 0.0), axis=1, keepdims=True)
        loss = -jnp.sum(picked, axis=0, keepdims=True) * (1.0 / batch)

        # Single full unmasked (8,128)-aligned store: [ probs | loss | zeros ].
        o_ref[...] = jnp.where(cls == d_out, loss, probs)

    return kernel


def discrete1_pallas(x, emb_pad, params, meta):
    batch = meta["batch"]
    out_pad = meta["out_pad"]
    d_out = meta["d_out"]

    inputs = [x.astype(jnp.float32), emb_pad, params["p1"]]
    if meta["n_extra"]:
        inputs.append(params["ph"])
    inputs.append(params["p3"])

    vmem = pl.BlockSpec(memory_space=pltpu.MemorySpace.VMEM)
    out = pl.pallas_call(
        _make_kernel(meta),
        out_shape=jax.ShapeDtypeStruct((batch, out_pad), jnp.float32),
        in_specs=[vmem] * len(inputs),
        out_specs=vmem,
    )(*inputs)

    probs = out[:, :d_out]
    loss = out[0, d_out]
    return probs, loss


# ----------------------------- params / packing -----------------------------

def _linear_init(key, fan_in, fan_out):
    # PyTorch Linear default init: U(-1/sqrt(fan_in), 1/sqrt(fan_in)),
    # weight stored pre-transposed as [fan_in, fan_out].
    kw, kb = jax.random.split(key)
    bound = 1.0 / math.sqrt(fan_in)
    w = jax.random.uniform(kw, (fan_in, fan_out), jnp.float32, -bound, bound)
    b = jax.random.uniform(kb, (fan_out,), jnp.float32, -bound, bound)
    return w, b


def init_params(key_params, key_emb, batch, d_total, dim, loc_embedding, h1,
                layer, d_out):
    """Returns (packed slabs, raw params for the reference, meta, padded emb)."""
    keep = [c for c in range(d_total) if c != dim]
    cont_cols = keep[:-1]
    loc_col = keep[-1]
    d_cont = len(cont_cols)
    d_in = d_cont + loc_embedding
    n_extra = layer - 1

    h1_pad = _round_up(max(h1, 128), 128)
    out_pad = _round_up(max(d_out + 1, 128), 128)
    emb_rows = _round_up(252, 8)
    off_we = _round_up(d_total, 8)
    off_b1 = off_we + _round_up(loc_embedding, 8)
    rows1 = _round_up(off_b1 + 3, 8)

    keys = jax.random.split(key_params, layer + 1)

    # Embedding table (PyTorch nn.Embedding default: N(0,1)); pad rows to 256.
    emb = jax.random.normal(key_emb, (252, loc_embedding), jnp.float32)
    emb_pad_np = np.zeros((emb_rows, loc_embedding), np.float32)
    emb_pad_np[:252] = np.asarray(emb)

    # linear1 over concat([continuous, embedding]); split rows accordingly.
    w1, b1 = _linear_init(keys[0], d_in, h1)
    w1_np, b1_np = np.asarray(w1), np.asarray(b1)
    p1_np = np.zeros((rows1, h1_pad), np.float32)
    for j, c in enumerate(cont_cols):            # fold column-drop into weights
        p1_np[c, :h1] = w1_np[j]
    p1_np[off_we:off_we + loc_embedding, :h1] = w1_np[d_cont:]
    p1_np[off_b1, :h1] = b1_np
    p1_np[off_b1 + 1, :h1] = 1.0                 # gamma (beta row stays 0)

    hidden_raw = []
    ph = None
    if n_extra:
        ph_np = np.zeros((n_extra, h1_pad + 8, h1_pad), np.float32)
        for i in range(n_extra):
            wi, bi = _linear_init(keys[1 + i], h1, h1)
            hidden_raw.append((wi, bi))
            ph_np[i, :h1, :h1] = np.asarray(wi)
            ph_np[i, h1_pad, :h1] = np.asarray(bi)
            ph_np[i, h1_pad + 1, :h1] = 1.0      # gamma (beta row stays 0)
        ph = jnp.asarray(ph_np)

    w3, b3 = _linear_init(keys[-1], h1, d_out)
    p3_np = np.zeros((h1_pad + 8, out_pad), np.float32)
    p3_np[:h1, :d_out] = np.asarray(w3)
    p3_np[h1_pad, :d_out] = np.asarray(b3)

    packed = {"p1": jnp.asarray(p1_np), "ph": ph, "p3": jnp.asarray(p3_np)}
    raw = {"w1": w1, "b1": b1, "hidden": hidden_raw, "w3": w3, "b3": b3, "emb": emb}
    meta = {"batch": batch, "d_total": d_total, "dim": dim, "loc_col": loc_col,
            "emb_dim": loc_embedding, "emb_rows": emb_rows, "h1": h1,
            "h1_pad": h1_pad, "n_extra": n_extra, "d_out": d_out,
            "out_pad": out_pad, "off_we": off_we, "off_b1": off_b1}
    return packed, raw, meta, jnp.asarray(emb_pad_np)


# ------------------------------- reference ----------------------------------

def reference_forward(x, dim, raw, d_out):
    """Pure-JAX (f32) mirror of the PyTorch forward for a correctness check."""
    B, d_total = x.shape
    keep = np.array([c for c in range(d_total) if c != dim])
    xr = x[:, keep]
    loc = xr[:, -1].astype(jnp.int32)
    feat = jnp.concatenate([xr[:, :-1], raw["emb"][loc]], axis=1)
    y = x[:, dim].astype(jnp.int32)

    def bn_relu(z):  # fresh BatchNorm1d: gamma=1, beta=0, biased batch variance
        mean = jnp.mean(z, axis=0, keepdims=True)
        var = jnp.mean((z - mean) ** 2, axis=0, keepdims=True)
        return jnp.maximum((z - mean) * jax.lax.rsqrt(var + _BN_EPS), 0.0)

    h = bn_relu(feat @ raw["w1"] + raw["b1"])
    for wi, bi in raw["hidden"]:
        h = bn_relu(h @ wi + bi)
    logits = h @ raw["w3"] + raw["b3"]
    log_p = jax.nn.log_softmax(logits, axis=1)
    probs = jnp.exp(log_p)
    loss = -jnp.mean(jnp.take_along_axis(log_p, y.reshape(-1, 1), axis=1))
    return probs, loss


# --------------------------------- main --------------------------------------

if __name__ == "__main__":
    # x is [B, D_total]; column `dim` holds the (integer) class label; after
    # removing it, the last remaining column holds an integer location id in
    # [0, 252); the other D_total-2 columns are continuous.
    B, D_total, dim = 8, 6, 2
    loc_embedding = 8
    H1, layer, D_out = 32, 3, 5

    key = jax.random.PRNGKey(0)
    k_x, k_lab, k_idx, k_emb, k_params = jax.random.split(key, 5)

    x = jax.random.normal(k_x, (B, D_total), jnp.float32)
    labels = jax.random.randint(k_lab, (B,), 0, D_out)
    loc_idx = jax.random.randint(k_idx, (B,), 0, 252)
    x = x.at[:, dim].set(labels.astype(jnp.float32))
    x = x.at[:, D_total - 1].set(loc_idx.astype(jnp.float32))

    params, raw, meta, emb_pad = init_params(k_params, k_emb, B, D_total, dim,
                                             loc_embedding, H1, layer, D_out)

    probs, loss = discrete1_pallas(x, emb_pad, params, meta)
    jax.block_until_ready(probs)

    ref_probs, ref_loss = reference_forward(x, dim, raw, D_out)

    probs_np = np.asarray(probs)
    loss_np = float(np.asarray(loss))
    assert np.isfinite(probs_np).all() and np.isfinite(loss_np)
    assert np.allclose(probs_np.sum(axis=1), 1.0, atol=1e-3)
    # Kernel uses bf16 matmul inputs (f32 accumulation) vs the pure-f32 reference.
    assert np.allclose(probs_np, np.asarray(ref_probs), rtol=5e-2, atol=5e-3)
    assert np.allclose(loss_np, float(np.asarray(ref_loss)), rtol=5e-2, atol=5e-3)

    print("KERNEL_OK")
</pallas_src>

<mosaic_0001>
module attributes {stable_mosaic.version = 11 : i64} {
  func.func @kernel(%arg0: memref<8x6xf32, #tpu.memory_space<vmem>>, %arg1: memref<256x8xf32, #tpu.memory_space<vmem>>, %arg2: memref<24x128xf32, #tpu.memory_space<vmem>>, %arg3: memref<2x136x128xf32, #tpu.memory_space<vmem>>, %arg4: memref<136x128xf32, #tpu.memory_space<vmem>>, %arg5: memref<8x128xf32, #tpu.memory_space<vmem>>) attributes {dimension_semantics = [], scalar_prefetch = 0 : i64, scratch_operands = 0 : i64, tpu.core_type = #tpu.core_type<tc>} {
    %c0 = arith.constant 0 : index
    %c0_0 = arith.constant 0 : index
    %0 = vector.load %arg0[%c0, %c0_0] : memref<8x6xf32, #tpu.memory_space<vmem>>, vector<8x6xf32>
    %1 = tpu.iota {dimensions = array<i32: 1>} : vector<8x6xi32>
    %2 = arith.sitofp %1 : vector<8x6xi32> to vector<8x6xf32>
    %cst = arith.constant 2.000000e+00 : f32
    %3 = vector.broadcast %cst : f32 to vector<8x6xf32>
    %4 = arith.cmpf oeq, %2, %3 : vector<8x6xf32>
    %cst_1 = arith.constant 0.000000e+00 : f32
    %5 = vector.broadcast %cst_1 : f32 to vector<8x6xf32>
    %6 = arith.select %4, %0, %5 : vector<8x6xi1>, vector<8x6xf32>
    %cst_2 = arith.constant dense<0.000000e+00> : vector<8xf32>
    %7 = vector.multi_reduction <add>, %6, %cst_2 [1] : vector<8x6xf32> to vector<8xf32>
    %8 = vector.shape_cast %7 : vector<8xf32> to vector<8x1xf32>
    %cst_3 = arith.constant 5.000000e+00 : f32
    %9 = vector.broadcast %cst_3 : f32 to vector<8x6xf32>
    %10 = arith.cmpf oeq, %2, %9 : vector<8x6xf32>
    %cst_4 = arith.constant 0.000000e+00 : f32
    %11 = vector.broadcast %cst_4 : f32 to vector<8x6xf32>
    %12 = arith.select %10, %0, %11 : vector<8x6xi1>, vector<8x6xf32>
    %cst_5 = arith.constant dense<0.000000e+00> : vector<8xf32>
    %13 = vector.multi_reduction <add>, %12, %cst_5 [1] : vector<8x6xf32> to vector<8xf32>
    %14 = vector.shape_cast %13 : vector<8xf32> to vector<8x1xf32>
    %15 = tpu.iota {dimensions = array<i32: 1>} : vector<8x256xi32>
    %16 = arith.sitofp %15 : vector<8x256xi32> to vector<8x256xf32>
    %17 = vector.broadcast %14 : vector<8x1xf32> to vector<8x256xf32>
    %18 = arith.cmpf oeq, %16, %17 : vector<8x256xf32>
    %19 = arith.extui %18 : vector<8x256xi1> to vector<8x256xi32>
    %20 = arith.sitofp %19 : vector<8x256xi32> to vector<8x256xf32>
    %21 = arith.truncf %20 : vector<8x256xf32> to vector<8x256xbf16>
    %c0_6 = arith.constant 0 : index
    %c0_7 = arith.constant 0 : index
    %22 = vector.load %arg1[%c0_6, %c0_7] : memref<256x8xf32, #tpu.memory_space<vmem>>, vector<256x8xf32>
    %23 = arith.truncf %22 : vector<256x8xf32> to vector<256x8xbf16>
    %cst_8 = arith.constant dense<0.000000e+00> : vector<8x8xf32>
    %24 = tpu.matmul %21, %23, %cst_8 {dimension_numbers = #tpu.dot_dimension_numbers<[1], [0], [0], [1], [0, 0, 1, 1], [], []>} : vector<8x256xbf16>, vector<256x8xbf16>, vector<8x8xf32> -> vector<8x8xf32>
    %25 = arith.truncf %0 : vector<8x6xf32> to vector<8x6xbf16>
    %c0_9 = arith.constant 0 : index
    %c0_10 = arith.constant 0 : index
    %26 = vector.load %arg2[%c0_9, %c0_10] : memref<24x128xf32, #tpu.memory_space<vmem>>, vector<6x128xf32>
    %27 = arith.truncf %26 : vector<6x128xf32> to vector<6x128xbf16>
    %cst_11 = arith.constant dense<0.000000e+00> : vector<8x128xf32>
    %28 = tpu.matmul %25, %27, %cst_11 {dimension_numbers = #tpu.dot_dimension_numbers<[1], [0], [0], [1], [0, 0, 1, 1], [], []>} : vector<8x6xbf16>, vector<6x128xbf16>, vector<8x128xf32> -> vector<8x128xf32>
    %29 = arith.truncf %24 : vector<8x8xf32> to vector<8x8xbf16>
    %c8 = arith.constant 8 : index
    %c0_12 = arith.constant 0 : index
    %30 = vector.load %arg2[%c8, %c0_12] : memref<24x128xf32, #tpu.memory_space<vmem>>, vector<8x128xf32>
    %31 = arith.truncf %30 : vector<8x128xf32> to vector<8x128xbf16>
    %cst_13 = arith.constant dense<0.000000e+00> : vector<8x128xf32>
    %32 = tpu.matmul %29, %31, %cst_13 {dimension_numbers = #tpu.dot_dimension_numbers<[1], [0], [0], [1], [0, 0, 1, 1], [], []>} : vector<8x8xbf16>, vector<8x128xbf16>, vector<8x128xf32> -> vector<8x128xf32>
    %33 = arith.addf %28, %32 : vector<8x128xf32>
    %c16 = arith.constant 16 : index
    %c0_14 = arith.constant 0 : index
    %34 = vector.load %arg2[%c16, %c0_14] : memref<24x128xf32, #tpu.memory_space<vmem>>, vector<1x128xf32>
    %35 = vector.broadcast %34 : vector<1x128xf32> to vector<8x128xf32>
    %36 = arith.addf %33, %35 : vector<8x128xf32>
    %c17 = arith.constant 17 : index
    %c0_15 = arith.constant 0 : index
    %37 = vector.load %arg2[%c17, %c0_15] : memref<24x128xf32, #tpu.memory_space<vmem>>, vector<1x128xf32>
    %c18 = arith.constant 18 : index
    %c0_16 = arith.constant 0 : index
    %38 = vector.load %arg2[%c18, %c0_16] : memref<24x128xf32, #tpu.memory_space<vmem>>, vector<1x128xf32>
    %cst_17 = arith.constant dense<0.000000e+00> : vector<128xf32>
    %39 = vector.multi_reduction <add>, %36, %cst_17 [0] : vector<8x128xf32> to vector<128xf32>
    %40 = vector.shape_cast %39 : vector<128xf32> to vector<1x128xf32>
    %cst_18 = arith.constant 1.250000e-01 : f32
    %41 = vector.broadcast %cst_18 : f32 to vector<1x128xf32>
    %42 = arith.mulf %40, %41 : vector<1x128xf32>
    %43 = vector.broadcast %42 : vector<1x128xf32> to vector<8x128xf32>
    %44 = arith.subf %36, %43 : vector<8x128xf32>
    %45 = arith.mulf %44, %44 : vector<8x128xf32>
    %cst_19 = arith.constant dense<0.000000e+00> : vector<128xf32>
    %46 = vector.multi_reduction <add>, %45, %cst_19 [0] : vector<8x128xf32> to vector<128xf32>
    %47 = vector.shape_cast %46 : vector<128xf32> to vector<1x128xf32>
    %cst_20 = arith.constant 1.250000e-01 : f32
    %48 = vector.broadcast %cst_20 : f32 to vector<1x128xf32>
    %49 = arith.mulf %47, %48 : vector<1x128xf32>
    %cst_21 = arith.constant 9.99999974E-6 : f32
    %50 = vector.broadcast %cst_21 : f32 to vector<1x128xf32>
    %51 = arith.addf %49, %50 : vector<1x128xf32>
    %52 = math.rsqrt %51 : vector<1x128xf32>
    %53 = arith.mulf %37, %52 : vector<1x128xf32>
    %54 = vector.broadcast %53 : vector<1x128xf32> to vector<8x128xf32>
    %55 = arith.mulf %44, %54 : vector<8x128xf32>
    %56 = vector.broadcast %38 : vector<1x128xf32> to vector<8x128xf32>
    %57 = arith.addf %55, %56 : vector<8x128xf32>
    %cst_22 = arith.constant 0.000000e+00 : f32
    %58 = vector.broadcast %cst_22 : f32 to vector<8x128xf32>
    %59 = arith.maximumf %57, %58 : vector<8x128xf32>
    %c0_23 = arith.constant 0 : index
    %c0_24 = arith.constant 0 : index
    %c0_25 = arith.constant 0 : index
    %60 = vector.load %arg3[%c0_23, %c0_24, %c0_25] : memref<2x136x128xf32, #tpu.memory_space<vmem>>, vector<1x136x128xf32>
    %61 = vector.shape_cast %60 : vector<1x136x128xf32> to vector<136x128xf32>
    %62 = arith.truncf %59 : vector<8x128xf32> to vector<8x128xbf16>
    %63 = vector.extract_strided_slice %61 {offsets = [0, 0], sizes = [128, 128], strides = [1, 1]} : vector<136x128xf32> to vector<128x128xf32>
    %64 = arith.truncf %63 : vector<128x128xf32> to vector<128x128xbf16>
    %cst_26 = arith.constant dense<0.000000e+00> : vector<8x128xf32>
    %65 = tpu.matmul %62, %64, %cst_26 {dimension_numbers = #tpu.dot_dimension_numbers<[1], [0], [0], [1], [0, 0, 1, 1], [], []>} : vector<8x128xbf16>, vector<128x128xbf16>, vector<8x128xf32> -> vector<8x128xf32>
    %66 = vector.extract_strided_slice %61 {offsets = [128, 0], sizes = [1, 128], strides = [1, 1]} : vector<136x128xf32> to vector<1x128xf32>
    %67 = vector.broadcast %66 : vector<1x128xf32> to vector<8x128xf32>
    %68 = arith.addf %65, %67 : vector<8x128xf32>
    %69 = vector.extract_strided_slice %61 {offsets = [129, 0], sizes = [1, 128], strides = [1, 1]} : vector<136x128xf32> to vector<1x128xf32>
    %70 = vector.extract_strided_slice %61 {offsets = [130, 0], sizes = [1, 128], strides = [1, 1]} : vector<136x128xf32> to vector<1x128xf32>
    %cst_27 = arith.constant dense<0.000000e+00> : vector<128xf32>
    %71 = vector.multi_reduction <add>, %68, %cst_27 [0] : vector<8x128xf32> to vector<128xf32>
    %72 = vector.shape_cast %71 : vector<128xf32> to vector<1x128xf32>
    %cst_28 = arith.constant 1.250000e-01 : f32
    %73 = vector.broadcast %cst_28 : f32 to vector<1x128xf32>
    %74 = arith.mulf %72, %73 : vector<1x128xf32>
    %75 = vector.broadcast %74 : vector<1x128xf32> to vector<8x128xf32>
    %76 = arith.subf %68, %75 : vector<8x128xf32>
    %77 = arith.mulf %76, %76 : vector<8x128xf32>
    %cst_29 = arith.constant dense<0.000000e+00> : vector<128xf32>
    %78 = vector.multi_reduction <add>, %77, %cst_29 [0] : vector<8x128xf32> to vector<128xf32>
    %79 = vector.shape_cast %78 : vector<128xf32> to vector<1x128xf32>
    %cst_30 = arith.constant 1.250000e-01 : f32
    %80 = vector.broadcast %cst_30 : f32 to vector<1x128xf32>
    %81 = arith.mulf %79, %80 : vector<1x128xf32>
    %cst_31 = arith.constant 9.99999974E-6 : f32
    %82 = vector.broadcast %cst_31 : f32 to vector<1x128xf32>
    %83 = arith.addf %81, %82 : vector<1x128xf32>
    %84 = math.rsqrt %83 : vector<1x128xf32>
    %85 = arith.mulf %69, %84 : vector<1x128xf32>
    %86 = vector.broadcast %85 : vector<1x128xf32> to vector<8x128xf32>
    %87 = arith.mulf %76, %86 : vector<8x128xf32>
    %88 = vector.broadcast %70 : vector<1x128xf32> to vector<8x128xf32>
    %89 = arith.addf %87, %88 : vector<8x128xf32>
    %cst_32 = arith.constant 0.000000e+00 : f32
    %90 = vector.broadcast %cst_32 : f32 to vector<8x128xf32>
    %91 = arith.maximumf %89, %90 : vector<8x128xf32>
    %c1 = arith.constant 1 : index
    %c0_33 = arith.constant 0 : index
    %c0_34 = arith.constant 0 : index
    %92 = vector.load %arg3[%c1, %c0_33, %c0_34] : memref<2x136x128xf32, #tpu.memory_space<vmem>>, vector<1x136x128xf32>
    %93 = vector.shape_cast %92 : vector<1x136x128xf32> to vector<136x128xf32>
    %94 = arith.truncf %91 : vector<8x128xf32> to vector<8x128xbf16>
    %95 = vector.extract_strided_slice %93 {offsets = [0, 0], sizes = [128, 128], strides = [1, 1]} : vector<136x128xf32> to vector<128x128xf32>
    %96 = arith.truncf %95 : vector<128x128xf32> to vector<128x128xbf16>
    %cst_35 = arith.constant dense<0.000000e+00> : vector<8x128xf32>
    %97 = tpu.matmul %94, %96, %cst_35 {dimension_numbers = #tpu.dot_dimension_numbers<[1], [0], [0], [1], [0, 0, 1, 1], [], []>} : vector<8x128xbf16>, vector<128x128xbf16>, vector<8x128xf32> -> vector<8x128xf32>
    %98 = vector.extract_strided_slice %93 {offsets = [128, 0], sizes = [1, 128], strides = [1, 1]} : vector<136x128xf32> to vector<1x128xf32>
    %99 = vector.broadcast %98 : vector<1x128xf32> to vector<8x128xf32>
    %100 = arith.addf %97, %99 : vector<8x128xf32>
    %101 = vector.extract_strided_slice %93 {offsets = [129, 0], sizes = [1, 128], strides = [1, 1]} : vector<136x128xf32> to vector<1x128xf32>
    %102 = vector.extract_strided_slice %93 {offsets = [130, 0], sizes = [1, 128], strides = [1, 1]} : vector<136x128xf32> to vector<1x128xf32>
    %cst_36 = arith.constant dense<0.000000e+00> : vector<128xf32>
    %103 = vector.multi_reduction <add>, %100, %cst_36 [0] : vector<8x128xf32> to vector<128xf32>
    %104 = vector.shape_cast %103 : vector<128xf32> to vector<1x128xf32>
    %cst_37 = arith.constant 1.250000e-01 : f32
    %105 = vector.broadcast %cst_37 : f32 to vector<1x128xf32>
    %106 = arith.mulf %104, %105 : vector<1x128xf32>
    %107 = vector.broadcast %106 : vector<1x128xf32> to vector<8x128xf32>
    %108 = arith.subf %100, %107 : vector<8x128xf32>
    %109 = arith.mulf %108, %108 : vector<8x128xf32>
    %cst_38 = arith.constant dense<0.000000e+00> : vector<128xf32>
    %110 = vector.multi_reduction <add>, %109, %cst_38 [0] : vector<8x128xf32> to vector<128xf32>
    %111 = vector.shape_cast %110 : vector<128xf32> to vector<1x128xf32>
    %cst_39 = arith.constant 1.250000e-01 : f32
    %112 = vector.broadcast %cst_39 : f32 to vector<1x128xf32>
    %113 = arith.mulf %111, %112 : vector<1x128xf32>
    %cst_40 = arith.constant 9.99999974E-6 : f32
    %114 = vector.broadcast %cst_40 : f32 to vector<1x128xf32>
    %115 = arith.addf %113, %114 : vector<1x128xf32>
    %116 = math.rsqrt %115 : vector<1x128xf32>
    %117 = arith.mulf %101, %116 : vector<1x128xf32>
    %118 = vector.broadcast %117 : vector<1x128xf32> to vector<8x128xf32>
    %119 = arith.mulf %108, %118 : vector<8x128xf32>
    %120 = vector.broadcast %102 : vector<1x128xf32> to vector<8x128xf32>
    %121 = arith.addf %119, %120 : vector<8x128xf32>
    %cst_41 = arith.constant 0.000000e+00 : f32
    %122 = vector.broadcast %cst_41 : f32 to vector<8x128xf32>
    %123 = arith.maximumf %121, %122 : vector<8x128xf32>
    %124 = arith.truncf %123 : vector<8x128xf32> to vector<8x128xbf16>
    %c0_42 = arith.constant 0 : index
    %c0_43 = arith.constant 0 : index
    %125 = vector.load %arg4[%c0_42, %c0_43] : memref<136x128xf32, #tpu.memory_space<vmem>>, vector<128x128xf32>
    %126 = arith.truncf %125 : vector<128x128xf32> to vector<128x128xbf16>
    %cst_44 = arith.constant dense<0.000000e+00> : vector<8x128xf32>
    %127 = tpu.matmul %124, %126, %cst_44 {dimension_numbers = #tpu.dot_dimension_numbers<[1], [0], [0], [1], [0, 0, 1, 1], [], []>} : vector<8x128xbf16>, vector<128x128xbf16>, vector<8x128xf32> -> vector<8x128xf32>
    %c128 = arith.constant 128 : index
    %c0_45 = arith.constant 0 : index
    %128 = vector.load %arg4[%c128, %c0_45] : memref<136x128xf32, #tpu.memory_space<vmem>>, vector<1x128xf32>
    %129 = vector.broadcast %128 : vector<1x128xf32> to vector<8x128xf32>
    %130 = arith.addf %127, %129 : vector<8x128xf32>
    %131 = tpu.iota {dimensions = array<i32: 1>} : vector<8x128xi32>
    %c5_i32 = arith.constant 5 : i32
    %132 = vector.broadcast %c5_i32 : i32 to vector<8x128xi32>
    %133 = arith.cmpi slt, %131, %132 : vector<8x128xi32>
    %cst_46 = arith.constant -1.000000e+30 : f32
    %134 = vector.broadcast %cst_46 : f32 to vector<8x128xf32>
    %135 = arith.select %133, %130, %134 : vector<8x128xi1>, vector<8x128xf32>
    %cst_47 = arith.constant dense<0xFF800000> : vector<8xf32>
    %136 = vector.multi_reduction <maximumf>, %135, %cst_47 [1] : vector<8x128xf32> to vector<8xf32>
    %137 = vector.shape_cast %136 : vector<8xf32> to vector<8x1xf32>
    %138 = vector.broadcast %137 : vector<8x1xf32> to vector<8x128xf32>
    %139 = arith.subf %135, %138 : vector<8x128xf32>
    %140 = math.exp %139 : vector<8x128xf32>
    %cst_48 = arith.constant dense<0.000000e+00> : vector<8xf32>
    %141 = vector.multi_reduction <add>, %140, %cst_48 [1] : vector<8x128xf32> to vector<8xf32>
    %142 = vector.shape_cast %141 : vector<8xf32> to vector<8x1xf32>
    %143 = tpu.reciprocal %142 : vector<8x1xf32> -> vector<8x1xf32>
    %144 = vector.broadcast %143 : vector<8x1xf32> to vector<8x128xf32>
    %145 = arith.mulf %140, %144 : vector<8x128xf32>
    %146 = math.log %142 : vector<8x1xf32>
    %147 = arith.addf %137, %146 : vector<8x1xf32>
    %148 = vector.broadcast %147 : vector<8x1xf32> to vector<8x128xf32>
    %149 = arith.subf %135, %148 : vector<8x128xf32>
    %150 = arith.sitofp %131 : vector<8x128xi32> to vector<8x128xf32>
    %151 = vector.broadcast %8 : vector<8x1xf32> to vector<8x128xf32>
    %152 = arith.cmpf oeq, %150, %151 : vector<8x128xf32>
    %cst_49 = arith.constant 0.000000e+00 : f32
    %153 = vector.broadcast %cst_49 : f32 to vector<8x128xf32>
    %154 = arith.select %152, %149, %153 : vector<8x128xi1>, vector<8x128xf32>
    %cst_50 = arith.constant dense<0.000000e+00> : vector<8xf32>
    %155 = vector.multi_reduction <add>, %154, %cst_50 [1] : vector<8x128xf32> to vector<8xf32>
    %156 = vector.shape_cast %155 : vector<8xf32> to vector<8x1xf32>
    %cst_51 = arith.constant dense<0.000000e+00> : vector<1xf32>
    %157 = vector.multi_reduction <add>, %156, %cst_51 [0] : vector<8x1xf32> to vector<1xf32>
    %158 = vector.shape_cast %157 : vector<1xf32> to vector<1x1xf32>
    %cst_52 = arith.constant 0.000000e+00 : f32
    %159 = vector.broadcast %cst_52 : f32 to vector<1x1xf32>
    %160 = arith.subf %159, %158 : vector<1x1xf32>
    %cst_53 = arith.constant 1.250000e-01 : f32
    %161 = vector.broadcast %cst_53 : f32 to vector<1x1xf32>
    %162 = arith.mulf %160, %161 : vector<1x1xf32>
    %c5_i32_54 = arith.constant 5 : i32
    %163 = vector.broadcast %c5_i32_54 : i32 to vector<8x128xi32>
    %164 = arith.cmpi eq, %131, %163 : vector<8x128xi32>
    %165 = vector.shape_cast %162 : vector<1x1xf32> to vector<1x1xf32>
    %166 = vector.broadcast %165 : vector<1x1xf32> to vector<8x128xf32>
    %167 = arith.select %164, %166, %145 : vector<8x128xi1>, vector<8x128xf32>
    %c0_55 = arith.constant 0 : index
    %c0_56 = arith.constant 0 : index
    %168 = vector.load %arg5[%c0_55, %c0_56] : memref<8x128xf32, #tpu.memory_space<vmem>>, vector<8x128xf32>
    tpu.vector_store %arg5[%c0_55, %c0_56], %167 {strides = array<i32>} : memref<8x128xf32, #tpu.memory_space<vmem>>, vector<8x128xf32>,
    return
  }
}

</mosaic_0001>

<llo_original>
// kernel: tpu_custom_call.1
$region0: #{tpu_custom_call.1}
  #allocation0 [shape = 'u32[]', space=smem, size = 0x4, offset = 0x4, fixed_abs, tag = 'smem constant byte address 0x4 - core index']
  #allocation1 [shape = 'u32[144,128]{1,0:T(1,128)}', space=vmem, size = 0x12000, scoped, tag = 'internal scratch']
  %s0 = inlined_call_operand.vmem [shape: f32[8,6], index: 0, kind: input, shape index: {}]
  %s1 = inlined_call_operand.vmem [shape: f32[256,8], index: 1, kind: input, shape index: {}]
  %s2 = inlined_call_operand.hbm [shape: f32[24,128], index: 2, kind: input, shape index: {}]
  %s3 = inlined_call_operand.vmem [shape: f32[2,136,128], index: 3, kind: input, shape index: {}]
  %s4 = inlined_call_operand.hbm [shape: f32[136,128], index: 4, kind: input, shape index: {}]
  %s5 = inlined_call_operand.hbm [shape: f32[8,128], index: 5, kind: output, shape index: {}]
  %s6 = sld [smem:[#allocation0]]
  $region38: #{tpu_custom_call.1} parent=0
    _
  %s8 = ssub.s32 1, %s6
  %s9 = scalar_select 0, %s8, %s6
  $region1: #{tpu_custom_call.1} parent=0
    #allocation2 [shape = 'u8[12288]{0}', space=vmem, size = 0x3000, scoped, tag = 'input window, operand 2, single buffered']
    #allocation3 [shape = 's32[1]{0}', space=sflag, size = 0x4, scoped, tag = 'scoped memory for tpu_custom_call.1']
    #allocation4 [shape = 's32[1]{0}', space=sflag, size = 0x4, scoped, tag = 'scoped memory for tpu_custom_call.1']
    #allocation5 [shape = 'u8[69632]{0}', space=vmem, size = 0x11000, scoped, tag = 'input window, operand 4, single buffered']
    #allocation6 [shape = 's32[1]{0}', space=sflag, size = 0x4, scoped, tag = 'scoped memory for tpu_custom_call.1']
    #allocation7 [shape = 'u8[4096]{0}', space=vmem, size = 0x1000, scoped, tag = 'output window, operand 0, single buffered']
    %10 = vsyncpa [#allocation3], 0
    %11 = vsyncpa [#allocation6], 0
    %12 = vsyncpa [#allocation4], 0
    // Predicated region
    $region2: #{tpu_custom_call.1} parent=1 // pred_check
      _
    $region3: #{tpu_custom_call.1} parent=1 // pred_check_branch
      %14 = sbr.rel (0) target = $region5
    $region4: #{tpu_custom_call.1} parent=1 // pred_region
      _
    $region5: #{tpu_custom_call.1} parent=1 // pred_fallthru
      _
    // Predicated region
    $region6: #{tpu_custom_call.1} parent=1 // pred_check
      _
    $region7: #{tpu_custom_call.1} parent=1 // pred_check_branch
      %16 = sbr.rel (0) target = $region9
    $region8: #{tpu_custom_call.1} parent=1 // pred_region
      _
    $region9: #{tpu_custom_call.1} parent=1 // pred_fallthru
      _
    // Predicated region
    $region10: #{tpu_custom_call.1} parent=1 // pred_check
      _
    $region11: #{tpu_custom_call.1} parent=1 // pred_check_branch
      %18 = sbr.rel (0) target = $region13
    $region12: #{tpu_custom_call.1} parent=1 // pred_region
      %s20 = ssub.s32 384, 384
      %21 = vsyncadd [#allocation3], %s20
      %s22 = sshll.u32 [#allocation2], 4
      %s23 = int_to_ptr.vmem [resolvable:$true] %s22
      %28 = dma.hbm_to_vmem [thread:$0]  %s2, 384, %s23, [#allocation3], 128, 128, 8
    $region13: #{tpu_custom_call.1} parent=1 // pred_fallthru
      _
    // Predicated region
    $region14: #{tpu_custom_call.1} parent=1 // pred_check
      _
    $region15: #{tpu_custom_call.1} parent=1 // pred_check_branch
      %30 = sbr.rel (0) target = $region17
    $region16: #{tpu_custom_call.1} parent=1 // pred_region
      _
    $region17: #{tpu_custom_call.1} parent=1 // pred_fallthru
      _
    // Predicated region
    $region18: #{tpu_custom_call.1} parent=1 // pred_check
      _
    $region19: #{tpu_custom_call.1} parent=1 // pred_check_branch
      %32 = sbr.rel (0) target = $region21
    $region20: #{tpu_custom_call.1} parent=1 // pred_region
      %s34 = ssub.s32 2176, 2176
      %35 = vsyncadd [#allocation6], %s34
      %s36 = sshll.u32 [#allocation5], 4
      %s37 = int_to_ptr.vmem [resolvable:$true] %s36
      %42 = dma.hbm_to_vmem [thread:$0]  %s4, 2176, %s37, [#allocation6], 128, 128, 8
    $region21: #{tpu_custom_call.1} parent=1 // pred_fallthru
      _
    // Predicated region
    $region22: #{tpu_custom_call.1} parent=1 // pred_check
      _
    $region23: #{tpu_custom_call.1} parent=1 // pred_check_branch
      %44 = sbr.rel (0) target = $region25
    $region24: #{tpu_custom_call.1} parent=1 // pred_region
      %45 = dma.done [#allocation3], 384
    $region25: #{tpu_custom_call.1} parent=1 // pred_fallthru
      _
    // Predicated region
    $region26: #{tpu_custom_call.1} parent=1 // pred_check
      _
    $region27: #{tpu_custom_call.1} parent=1 // pred_check_branch
      %47 = sbr.rel (0) target = $region29
    $region28: #{tpu_custom_call.1} parent=1 // pred_region
      %48 = dma.done [#allocation6], 2176
    $region29: #{tpu_custom_call.1} parent=1 // pred_fallthru
      _
    %v50 = vld [vmem:[%s0] sm:$0xff]
    %v51 = vlaneseq
    %v52 = vand.u32 %v51, 127
    %v53 = vcvt.s32.f32 %v52
    %vm54 = vcmp.eq.f32.partialorder %v53, 2.0
    %v55 = vsel %vm54, %v50, 0.0
    %vm56 = vcmask 48128
    %v57 = vsel %vm56, %v55, 0.0
    %58 = vadd.xlane.f32.xlu0 %v57
    %v59 = vpop.xlane.xlu0 %58
    %vm60 = vcmp.eq.f32.partialorder %v53, 5.0
    %v61 = vsel %vm60, %v50, 0.0
    %v62 = vsel %vm56, %v61, 0.0
    %63 = vadd.xlane.f32.xlu0 %v62
    %v64 = vpop.xlane.xlu0 %63
    %v65 = vadd.s32 %v52, 128
    %v66 = vcvt.s32.f32 %v65
    %vm67 = vcmp.eq.f32.partialorder %v53, %v64
    %vm68 = vcmp.eq.f32.partialorder %v66, %v64
    %v69 = vsel %vm67, 1, 0
    %v70 = vsel %vm68, 1, 0
    %v71 = vcvt.s32.f32 %v69
    %v72 = vcvt.s32.f32 %v70
    %v73 = vpack.c.bf16 %v71, %v71
    %v74 = vpack.c.bf16 %v72, %v72
    %v75 = vld [vmem:[%s1] sm:$0xff]
    %v76 = vld [vmem:[%s1 + $0x8] sm:$0xff]
    %v77 = vld [vmem:[%s1 + $0x10] sm:$0xff]
    %v78 = vld [vmem:[%s1 + $0x18] sm:$0xff]
    %v79 = vld [vmem:[%s1 + $0x20] sm:$0xff]
    %v80 = vld [vmem:[%s1 + $0x28] sm:$0xff]
    %v81 = vld [vmem:[%s1 + $0x30] sm:$0xff]
    %v82 = vld [vmem:[%s1 + $0x38] sm:$0xff]
    %v83 = vld [vmem:[%s1 + $0x40] sm:$0xff]
    %v84 = vld [vmem:[%s1 + $0x48] sm:$0xff]
    %v85 = vld [vmem:[%s1 + $0x50] sm:$0xff]
    %v86 = vld [vmem:[%s1 + $0x58] sm:$0xff]
    %v87 = vld [vmem:[%s1 + $0x60] sm:$0xff]
    %v88 = vld [vmem:[%s1 + $0x68] sm:$0xff]
    %v89 = vld [vmem:[%s1 + $0x70] sm:$0xff]
    %v90 = vld [vmem:[%s1 + $0x78] sm:$0xff]
    %v91 = vld [vmem:[%s1 + $0x80] sm:$0xff]
    %v92 = vld [vmem:[%s1 + $0x88] sm:$0xff]
    %v93 = vld [vmem:[%s1 + $0x90] sm:$0xff]
    %v94 = vld [vmem:[%s1 + $0x98] sm:$0xff]
    %v95 = vld [vmem:[%s1 + $0xa0] sm:$0xff]
    %v96 = vld [vmem:[%s1 + $0xa8] sm:$0xff]
    %v97 = vld [vmem:[%s1 + $0xb0] sm:$0xff]
    %v98 = vld [vmem:[%s1 + $0xb8] sm:$0xff]
    %v99 = vld [vmem:[%s1 + $0xc0] sm:$0xff]
    %v100 = vld [vmem:[%s1 + $0xc8] sm:$0xff]
    %v101 = vld [vmem:[%s1 + $0xd0] sm:$0xff]
    %v102 = vld [vmem:[%s1 + $0xd8] sm:$0xff]
    %v103 = vld [vmem:[%s1 + $0xe0] sm:$0xff]
    %v104 = vld [vmem:[%s1 + $0xe8] sm:$0xff]
    %v105 = vld [vmem:[%s1 + $0xf0] sm:$0xff]
    %v106 = vld [vmem:[%s1 + $0xf8] sm:$0xff]
    %v107 = vpack.c.bf16 %v76, %v75
    %v108 = vpack.c.bf16 %v78, %v77
    %v109 = vpack.c.bf16 %v80, %v79
    %v110 = vpack.c.bf16 %v82, %v81
    %v111 = vpack.c.bf16 %v84, %v83
    %v112 = vpack.c.bf16 %v86, %v85
    %v113 = vpack.c.bf16 %v88, %v87
    %v114 = vpack.c.bf16 %v90, %v89
    %v115 = vpack.c.bf16 %v92, %v91
    %v116 = vpack.c.bf16 %v94, %v93
    %v117 = vpack.c.bf16 %v96, %v95
    %v118 = vpack.c.bf16 %v98, %v97
    %v119 = vpack.c.bf16 %v100, %v99
    %v120 = vpack.c.bf16 %v102, %v101
    %v121 = vpack.c.bf16 %v104, %v103
    %v122 = vpack.c.bf16 %v106, %v105
    %123 = vmatprep.subr.bf16.mxu0 0
    %124 = vmatpush1.bf16.msra.mxu0 %v107
    %125 = vmatprep.subr.bf16.mxu0 0
    %126 = vmatpush1.bf16.msra.mxu0 %v108
    %127 = vmatprep.subr.bf16.mxu0 0
    %128 = vmatpush1.bf16.msra.mxu0 %v109
    %129 = vmatprep.subr.bf16.mxu0 0
    %130 = vmatpush1.bf16.msra.mxu0 %v110
    %131 = vmatprep.subr.bf16.mxu0 0
    %132 = vmatpush1.bf16.msra.mxu0 %v111
    %133 = vmatprep.subr.bf16.mxu0 0
    %134 = vmatpush1.bf16.msra.mxu0 %v112
    %135 = vmatprep.subr.bf16.mxu0 0
    %136 = vmatpush1.bf16.msra.mxu0 %v113
    %137 = vmatprep.subr.bf16.mxu0 0
    %138 = vmatpush1.bf16.msra.mxu0 %v114
    %139 = vmatprep.subr.bf16.mxu0 0
    %140 = vmatpush1.bf16.msra.mxu0 %v115
    %141 = vmatprep.subr.bf16.mxu0 0
    %142 = vmatpush1.bf16.msra.mxu0 %v116
    %143 = vmatprep.subr.bf16.mxu0 0
    %144 = vmatpush1.bf16.msra.mxu0 %v117
    %145 = vmatprep.subr.bf16.mxu0 0
    %146 = vmatpush1.bf16.msra.mxu0 %v118
    %147 = vmatprep.subr.bf16.mxu0 0
    %148 = vmatpush1.bf16.msra.mxu0 %v119
    %149 = vmatprep.subr.bf16.mxu0 0
    %150 = vmatpush1.bf16.msra.mxu0 %v120
    %151 = vmatprep.subr.bf16.mxu0 0
    %152 = vmatpush1.bf16.msra.mxu0 %v121
    %153 = vmatprep.subr.bf16.mxu0 0
    %154 = vmatpush1.bf16.msra.mxu0 %v122
    %155 = vmatprep.mubr.bf16.mxu0 %v74
    %156 = vmatmul.mubr.bf16.gmra.mrb[0].mxu0 %v73
    %v157 = vpop.f32.mrb[0].mxu0
    %v158 = vadd.f32 0.0, %v157
    %v159 = vpop.f32.mrb[0].mxu0
    %v160 = vpop.f32.mrb[0].mxu0
    %v161 = vpop.f32.mrb[0].mxu0
    %162 = vdwg.mxu0
    %v163 = vpack.c.bf16 %v50, %v50
    %v164 = vld [vmem:[#allocation2] sm:$0x3f]
    %v165 = vpack.c.bf16 %v164, %v164
    %v166 = vpack.c.bf16 %v158, %v158
    %v167 = vld [vmem:[#allocation2 + $0x8] sm:$0xff]
    %v168 = vpack.c.bf16 %v167, %v167
    %vm169 = vcmask 64512
    %v171 = vsel %vm169, %v166, 0
    %vm173 = vcmask 1043456
    %v175 = vsel %vm173, %v168, 0
    %177 = vmatprep.subr.bf16.mxu0 0
    %178 = vmatpush1.bf16.msra.mxu0 %v175
    %179 = vmatprep.subr.bf16.mxu0 0
    %180 = vmatpush1.bf16.msra.mxu0 0
    %181 = vmatprep.subr.bf16.mxu0 0
    %182 = vmatpush1.bf16.msra.mxu0 0
    %183 = vmatprep.subr.bf16.mxu0 0
    %184 = vmatpush1.bf16.msra.mxu0 0
    %185 = vmatprep.subr.bf16.mxu0 0
    %186 = vmatpush1.bf16.msra.mxu0 0
    %187 = vmatprep.subr.bf16.mxu0 0
    %188 = vmatpush1.bf16.msra.mxu0 0
    %189 = vmatprep.subr.bf16.mxu0 0
    %190 = vmatpush1.bf16.msra.mxu0 0
    %191 = vmatprep.subr.bf16.mxu0 0
    %192 = vmatpush1.bf16.msra.mxu0 0
    %193 = vmatprep.subr.bf16.mxu0 0
    %194 = vmatpush1.bf16.msra.mxu0 0
    %195 = vmatprep.subr.bf16.mxu0 0
    %196 = vmatpush1.bf16.msra.mxu0 0
    %197 = vmatprep.subr.bf16.mxu0 0
    %198 = vmatpush1.bf16.msra.mxu0 0
    %199 = vmatprep.subr.bf16.mxu0 0
    %200 = vmatpush1.bf16.msra.mxu0 0
    %201 = vmatprep.subr.bf16.mxu0 0
    %202 = vmatpush1.bf16.msra.mxu0 0
    %203 = vmatprep.subr.bf16.mxu0 0
    %204 = vmatpush1.bf16.msra.mxu0 0
    %205 = vmatprep.subr.bf16.mxu0 0
    %206 = vmatpush1.bf16.msra.mxu0 0
    %207 = vmatprep.subr.bf16.mxu0 0
    %208 = vmatpush1.bf16.msra.mxu0 0
    %209 = vmatprep.mubr.bf16.mxu0 0
    %210 = vmatmul.mubr.bf16.gmra.mrb[0].mxu0 %v171
    %v211 = vpop.f32.mrb[0].mxu0
    %v212 = vadd.f32 0.0, %v211
    %v213 = vpop.f32.mrb[0].mxu0
    %v214 = vpop.f32.mrb[0].mxu0
    %v215 = vpop.f32.mrb[0].mxu0
    %216 = vdwg.mxu0
    %v218 = vsel %vm56, %v163, 0
    %vm220 = vcmask 1042432
    %v222 = vsel %vm220, %v165, 0
    %224 = vmatprep.subr.bf16.mxu0 0
    %225 = vmatpush1.bf16.msra.mxu0 %v222
    %226 = vmatprep.subr.bf16.mxu0 0
    %227 = vmatpush1.bf16.msra.mxu0 0
    %228 = vmatprep.subr.bf16.mxu0 0
    %229 = vmatpush1.bf16.msra.mxu0 0
    %230 = vmatprep.subr.bf16.mxu0 0
    %231 = vmatpush1.bf16.msra.mxu0 0
    %232 = vmatprep.subr.bf16.mxu0 0
    %233 = vmatpush1.bf16.msra.mxu0 0
    %234 = vmatprep.subr.bf16.mxu0 0
    %235 = vmatpush1.bf16.msra.mxu0 0
    %236 = vmatprep.subr.bf16.mxu0 0
    %237 = vmatpush1.bf16.msra.mxu0 0
    %238 = vmatprep.subr.bf16.mxu0 0
    %239 = vmatpush1.bf16.msra.mxu0 0
    %240 = vmatprep.subr.bf16.mxu0 0
    %241 = vmatpush1.bf16.msra.mxu0 0
    %242 = vmatprep.subr.bf16.mxu0 0
    %243 = vmatpush1.bf16.msra.mxu0 0
    %244 = vmatprep.subr.bf16.mxu0 0
    %245 = vmatpush1.bf16.msra.mxu0 0
    %246 = vmatprep.subr.bf16.mxu0 0
    %247 = vmatpush1.bf16.msra.mxu0 0
    %248 = vmatprep.subr.bf16.mxu0 0
    %249 = vmatpush1.bf16.msra.mxu0 0
    %250 = vmatprep.subr.bf16.mxu0 0
    %251 = vmatpush1.bf16.msra.mxu0 0
    %252 = vmatprep.subr.bf16.mxu0 0
    %253 = vmatpush1.bf16.msra.mxu0 0
    %254 = vmatprep.subr.bf16.mxu0 0
    %255 = vmatpush1.bf16.msra.mxu0 0
    %256 = vmatprep.mubr.bf16.mxu0 0
    %257 = vmatmul.mubr.bf16.gmra.mrb[0].mxu0 %v218
    %v258 = vpop.f32.mrb[0].mxu0
    %v259 = vadd.f32 %v212, %v258
    %v260 = vpop.f32.mrb[0].mxu0
    %v261 = vpop.f32.mrb[0].mxu0
    %v262 = vpop.f32.mrb[0].mxu0
    %263 = vdwg.mxu0
    %v264 = vld [vmem:[#allocation2 + $0x10] sm:$0x1]
    %v265 = vlaneseq
    %v266 = vshrl.u32 %v265, 7
    %v267 = vsub.s32 0, %v266
    %v268 = vrot.slane %v264, %v267
    %v269 = vadd.f32 %v259, %v268
    %v270 = vld [vmem:[#allocation2 + $0x11] sm:$0x1]
    %v271 = vld [vmem:[#allocation2 + $0x12] sm:$0x1]
    %v272 = vrot.slane %v269, 4
    %v273 = vadd.f32 %v269, %v272
    %v274 = vrot.slane %v273, 2
    %v275 = vadd.f32 %v273, %v274
    %v276 = vrot.slane %v275, 1
    %v277 = vadd.f32 %v275, %v276
    %v278 = vmul.f32 %v277, 0.125
    %v279 = vsub.f32 %v269, %v278
    %v280 = vmul.f32 %v279, %v279
    %v281 = vrot.slane %v280, 4
    %v282 = vadd.f32 %v280, %v281
    %v283 = vrot.slane %v282, 2
    %v284 = vadd.f32 %v282, %v283
    %v285 = vrot.slane %v284, 1
    %v286 = vadd.f32 %v284, %v285
    %v287 = vmul.f32 %v286, 0.125
    %v288 = vadd.f32 %v287, 1e-05
    %v289 = vrsqrt.pop %v288
    %v290 = vmul.f32 %v270, %v289
    %v291 = vlaneseq
    %v292 = vshrl.u32 %v291, 7
    %v293 = vsub.s32 0, %v292
    %v294 = vrot.slane %v290, %v293
    %v295 = vmul.f32 %v279, %v294
    %v296 = vlaneseq
    %v297 = vshrl.u32 %v296, 7
    %v298 = vsub.s32 0, %v297
    %v299 = vrot.slane %v271, %v298
    %v300 = vadd.f32 %v295, %v299
    %v301 = vmax.f32 %v300, 0.0
    %v302 = vld [vmem:[%s3] sm:$0xff]
    %v303 = vld [vmem:[%s3 + $0x8] sm:$0xff]
    %v304 = vld [vmem:[%s3 + $0x10] sm:$0xff]
    %v305 = vld [vmem:[%s3 + $0x18] sm:$0xff]
    %v306 = vld [vmem:[%s3 + $0x20] sm:$0xff]
    %v307 = vld [vmem:[%s3 + $0x28] sm:$0xff]
    %v308 = vld [vmem:[%s3 + $0x30] sm:$0xff]
    %v309 = vld [vmem:[%s3 + $0x38] sm:$0xff]
    %v310 = vld [vmem:[%s3 + $0x40] sm:$0xff]
    %v311 = vld [vmem:[%s3 + $0x48] sm:$0xff]
    %v312 = vld [vmem:[%s3 + $0x50] sm:$0xff]
    %v313 = vld [vmem:[%s3 + $0x58] sm:$0xff]
    %v314 = vld [vmem:[%s3 + $0x60] sm:$0xff]
    %v315 = vld [vmem:[%s3 + $0x68] sm:$0xff]
    %v316 = vld [vmem:[%s3 + $0x70] sm:$0xff]
    %v317 = vld [vmem:[%s3 + $0x78] sm:$0xff]
    %v318 = vld [vmem:[%s3 + $0x80] sm:$0xff]
    %v319 = vpack.c.bf16 %v301, %v301
    %v320 = vpack.c.bf16 %v303, %v302
    %v321 = vpack.c.bf16 %v305, %v304
    %v322 = vpack.c.bf16 %v307, %v306
    %v323 = vpack.c.bf16 %v309, %v308
    %v324 = vpack.c.bf16 %v311, %v310
    %v325 = vpack.c.bf16 %v313, %v312
    %v326 = vpack.c.bf16 %v315, %v314
    %v327 = vpack.c.bf16 %v317, %v316
    %v328 = vlaneseq
    %v329 = vshrl.u32 %v328, 7
    %v330 = vsub.s32 0, %v329
    %v331 = vrot.slane %v318, %v330
    %332 = vmatprep.subr.bf16.mxu0 0
    %333 = vmatpush1.bf16.msra.mxu0 %v320
    %334 = vmatprep.subr.bf16.mxu0 0
    %335 = vmatpush1.bf16.msra.mxu0 %v321
    %336 = vmatprep.subr.bf16.mxu0 0
    %337 = vmatpush1.bf16.msra.mxu0 %v322
    %338 = vmatprep.subr.bf16.mxu0 0
    %339 = vmatpush1.bf16.msra.mxu0 %v323
    %340 = vmatprep.subr.bf16.mxu0 0
    %341 = vmatpush1.bf16.msra.mxu0 %v324
    %342 = vmatprep.subr.bf16.mxu0 0
    %343 = vmatpush1.bf16.msra.mxu0 %v325
    %344 = vmatprep.subr.bf16.mxu0 0
    %345 = vmatpush1.bf16.msra.mxu0 %v326
    %346 = vmatprep.subr.bf16.mxu0 0
    %347 = vmatpush1.bf16.msra.mxu0 %v327
    %348 = vmatprep.subr.bf16.mxu0 0
    %349 = vmatpush1.bf16.msra.mxu0 0
    %350 = vmatprep.subr.bf16.mxu0 0
    %351 = vmatpush1.bf16.msra.mxu0 0
    %352 = vmatprep.subr.bf16.mxu0 0
    %353 = vmatpush1.bf16.msra.mxu0 0
    %354 = vmatprep.subr.bf16.mxu0 0
    %355 = vmatpush1.bf16.msra.mxu0 0
    %356 = vmatprep.subr.bf16.mxu0 0
    %357 = vmatpush1.bf16.msra.mxu0 0
    %358 = vmatprep.subr.bf16.mxu0 0
    %359 = vmatpush1.bf16.msra.mxu0 0
    %360 = vmatprep.subr.bf16.mxu0 0
    %361 = vmatpush1.bf16.msra.mxu0 0
    %362 = vmatprep.subr.bf16.mxu0 0
    %363 = vmatpush1.bf16.msra.mxu0 0
    %364 = vmatprep.mubr.bf16.mxu0 0
    %365 = vmatmul.mubr.bf16.gmra.mrb[0].mxu0 %v319
    %v366 = vpop.f32.mrb[0].mxu0
    %v367 = vadd.f32 %v331, %v366
    %v368 = vpop.f32.mrb[0].mxu0
    %v369 = vpop.f32.mrb[0].mxu0
    %v370 = vpop.f32.mrb[0].mxu0
    %371 = vdwg.mxu0
    %v372 = vrot.slane %v367, 4
    %v373 = vadd.f32 %v367, %v372
    %v374 = vrot.slane %v373, 2
    %v375 = vadd.f32 %v373, %v374
    %v376 = vrot.slane %v375, 1
    %v377 = vadd.f32 %v375, %v376
    %v378 = vmul.f32 %v377, 0.125
    %v379 = vsub.f32 %v367, %v378
    %v380 = vmul.f32 %v379, %v379
    %v381 = vrot.slane %v380, 4
    %v382 = vadd.f32 %v380, %v381
    %v383 = vrot.slane %v382, 2
    %v384 = vadd.f32 %v382, %v383
    %v385 = vrot.slane %v384, 1
    %v386 = vadd.f32 %v384, %v385
    %v387 = vmul.f32 %v386, 0.125
    %v388 = vadd.f32 %v387, 1e-05
    %v389 = vrsqrt.pop %v388
    %v390 = vmul.f32 %v318, %v389
    %v391 = vlaneseq
    %v392 = vshrl.u32 %v391, 7
    %v393 = vsub.s32 1, %v392
    %v394 = vrot.slane %v390, %v393
    %v395 = vmul.f32 %v379, %v394
    %v396 = vlaneseq
    %v397 = vshrl.u32 %v396, 7
    %v398 = vsub.s32 2, %v397
    %v399 = vrot.slane %v318, %v398
    %v400 = vadd.f32 %v395, %v399
    %v401 = vmax.f32 %v400, 0.0
    %s402 = scalar_lea.vmem %s3, 136
    %v403 = vld [vmem:[%s402] sm:$0xff]
    %v404 = vld [vmem:[%s402 + $0x8] sm:$0xff]
    %v405 = vld [vmem:[%s402 + $0x10] sm:$0xff]
    %v406 = vld [vmem:[%s402 + $0x18] sm:$0xff]
    %v407 = vld [vmem:[%s402 + $0x20] sm:$0xff]
    %v408 = vld [vmem:[%s402 + $0x28] sm:$0xff]
    %v409 = vld [vmem:[%s402 + $0x30] sm:$0xff]
    %v410 = vld [vmem:[%s402 + $0x38] sm:$0xff]
    %v411 = vld [vmem:[%s402 + $0x40] sm:$0xff]
    %v412 = vld [vmem:[%s402 + $0x48] sm:$0xff]
    %v413 = vld [vmem:[%s402 + $0x50] sm:$0xff]
    %v414 = vld [vmem:[%s402 + $0x58] sm:$0xff]
    %v415 = vld [vmem:[%s402 + $0x60] sm:$0xff]
    %v416 = vld [vmem:[%s402 + $0x68] sm:$0xff]
    %v417 = vld [vmem:[%s402 + $0x70] sm:$0xff]
    %v418 = vld [vmem:[%s402 + $0x78] sm:$0xff]
    %v419 = vld [vmem:[%s402 + $0x80] sm:$0xff]
    %v420 = vpack.c.bf16 %v401, %v401
    %v421 = vpack.c.bf16 %v404, %v403
    %v422 = vpack.c.bf16 %v406, %v405
    %v423 = vpack.c.bf16 %v408, %v407
    %v424 = vpack.c.bf16 %v410, %v409
    %v425 = vpack.c.bf16 %v412, %v411
    %v426 = vpack.c.bf16 %v414, %v413
    %v427 = vpack.c.bf16 %v416, %v415
    %v428 = vpack.c.bf16 %v418, %v417
    %v429 = vlaneseq
    %v430 = vshrl.u32 %v429, 7
    %v431 = vsub.s32 0, %v430
    %v432 = vrot.slane %v419, %v431
    %433 = vmatprep.subr.bf16.mxu0 0
    %434 = vmatpush1.bf16.msra.mxu0 %v421
    %435 = vmatprep.subr.bf16.mxu0 0
    %436 = vmatpush1.bf16.msra.mxu0 %v422
    %437 = vmatprep.subr.bf16.mxu0 0
    %438 = vmatpush1.bf16.msra.mxu0 %v423
    %439 = vmatprep.subr.bf16.mxu0 0
    %440 = vmatpush1.bf16.msra.mxu0 %v424
    %441 = vmatprep.subr.bf16.mxu0 0
    %442 = vmatpush1.bf16.msra.mxu0 %v425
    %443 = vmatprep.subr.bf16.mxu0 0
    %444 = vmatpush1.bf16.msra.mxu0 %v426
    %445 = vmatprep.subr.bf16.mxu0 0
    %446 = vmatpush1.bf16.msra.mxu0 %v427
    %447 = vmatprep.subr.bf16.mxu0 0
    %448 = vmatpush1.bf16.msra.mxu0 %v428
    %449 = vmatprep.subr.bf16.mxu0 0
    %450 = vmatpush1.bf16.msra.mxu0 0
    %451 = vmatprep.subr.bf16.mxu0 0
    %452 = vmatpush1.bf16.msra.mxu0 0
    %453 = vmatprep.subr.bf16.mxu0 0
    %454 = vmatpush1.bf16.msra.mxu0 0
    %455 = vmatprep.subr.bf16.mxu0 0
    %456 = vmatpush1.bf16.msra.mxu0 0
    %457 = vmatprep.subr.bf16.mxu0 0
    %458 = vmatpush1.bf16.msra.mxu0 0
    %459 = vmatprep.subr.bf16.mxu0 0
    %460 = vmatpush1.bf16.msra.mxu0 0
    %461 = vmatprep.subr.bf16.mxu0 0
    %462 = vmatpush1.bf16.msra.mxu0 0
    %463 = vmatprep.subr.bf16.mxu0 0
    %464 = vmatpush1.bf16.msra.mxu0 0
    %465 = vmatprep.mubr.bf16.mxu0 0
    %466 = vmatmul.mubr.bf16.gmra.mrb[0].mxu0 %v420
    %v467 = vpop.f32.mrb[0].mxu0
    %v468 = vadd.f32 %v432, %v467
    %v469 = vpop.f32.mrb[0].mxu0
    %v470 = vpop.f32.mrb[0].mxu0
    %v471 = vpop.f32.mrb[0].mxu0
    %472 = vdwg.mxu0
    %v473 = vrot.slane %v468, 4
    %v474 = vadd.f32 %v468, %v473
    %v475 = vrot.slane %v474, 2
    %v476 = vadd.f32 %v474, %v475
    %v477 = vrot.slane %v476, 1
    %v478 = vadd.f32 %v476, %v477
    %v479 = vmul.f32 %v478, 0.125
    %v480 = vsub.f32 %v468, %v479
    %v481 = vmul.f32 %v480, %v480
    %v482 = vrot.slane %v481, 4
    %v483 = vadd.f32 %v481, %v482
    %v484 = vrot.slane %v483, 2
    %v485 = vadd.f32 %v483, %v484
    %v486 = vrot.slane %v485, 1
    %v487 = vadd.f32 %v485, %v486
    %v488 = vmul.f32 %v487, 0.125
    %v489 = vadd.f32 %v488, 1e-05
    %v490 = vrsqrt.pop %v489
    %v491 = vmul.f32 %v419, %v490
    %v492 = vlaneseq
    %v493 = vshrl.u32 %v492, 7
    %v494 = vsub.s32 1, %v493
    %v495 = vrot.slane %v491, %v494
    %v496 = vmul.f32 %v480, %v495
    %v497 = vlaneseq
    %v498 = vshrl.u32 %v497, 7
    %v499 = vsub.s32 2, %v498
    %v500 = vrot.slane %v419, %v499
    %v501 = vadd.f32 %v496, %v500
    %v502 = vmax.f32 %v501, 0.0
    %v503 = vpack.c.bf16 %v502, %v502
    %v504 = vld [vmem:[#allocation5] sm:$0xff]
    %v505 = vld [vmem:[#allocation5 + $0x8] sm:$0xff]
    %v506 = vld [vmem:[#allocation5 + $0x10] sm:$0xff]
    %v507 = vld [vmem:[#allocation5 + $0x18] sm:$0xff]
    %v508 = vld [vmem:[#allocation5 + $0x20] sm:$0xff]
    %v509 = vld [vmem:[#allocation5 + $0x28] sm:$0xff]
    %v510 = vld [vmem:[#allocation5 + $0x30] sm:$0xff]
    %v511 = vld [vmem:[#allocation5 + $0x38] sm:$0xff]
    %v512 = vld [vmem:[#allocation5 + $0x40] sm:$0xff]
    %v513 = vld [vmem:[#allocation5 + $0x48] sm:$0xff]
    %v514 = vld [vmem:[#allocation5 + $0x50] sm:$0xff]
    %v515 = vld [vmem:[#allocation5 + $0x58] sm:$0xff]
    %v516 = vld [vmem:[#allocation5 + $0x60] sm:$0xff]
    %v517 = vld [vmem:[#allocation5 + $0x68] sm:$0xff]
    %v518 = vld [vmem:[#allocation5 + $0x70] sm:$0xff]
    %v519 = vld [vmem:[#allocation5 + $0x78] sm:$0xff]
    %v520 = vpack.c.bf16 %v505, %v504
    %v521 = vpack.c.bf16 %v507, %v506
    %v522 = vpack.c.bf16 %v509, %v508
    %v523 = vpack.c.bf16 %v511, %v510
    %v524 = vpack.c.bf16 %v513, %v512
    %v525 = vpack.c.bf16 %v515, %v514
    %v526 = vpack.c.bf16 %v517, %v516
    %v527 = vpack.c.bf16 %v519, %v518
    %v528 = vld [vmem:[#allocation5 + $0x80] sm:$0x1]
    %v529 = vlaneseq
    %v530 = vshrl.u32 %v529, 7
    %v531 = vsub.s32 0, %v530
    %v532 = vrot.slane %v528, %v531
    %533 = vmatprep.subr.bf16.mxu0 0
    %534 = vmatpush1.bf16.msra.mxu0 %v520
    %535 = vmatprep.subr.bf16.mxu0 0
    %536 = vmatpush1.bf16.msra.mxu0 %v521
    %537 = vmatprep.subr.bf16.mxu0 0
    %538 = vmatpush1.bf16.msra.mxu0 %v522
    %539 = vmatprep.subr.bf16.mxu0 0
    %540 = vmatpush1.bf16.msra.mxu0 %v523
    %541 = vmatprep.subr.bf16.mxu0 0
    %542 = vmatpush1.bf16.msra.mxu0 %v524
    %543 = vmatprep.subr.bf16.mxu0 0
    %544 = vmatpush1.bf16.msra.mxu0 %v525
    %545 = vmatprep.subr.bf16.mxu0 0
    %546 = vmatpush1.bf16.msra.mxu0 %v526
    %547 = vmatprep.subr.bf16.mxu0 0
    %548 = vmatpush1.bf16.msra.mxu0 %v527
    %549 = vmatprep.subr.bf16.mxu0 0
    %550 = vmatpush1.bf16.msra.mxu0 0
    %551 = vmatprep.subr.bf16.mxu0 0
    %552 = vmatpush1.bf16.msra.mxu0 0
    %553 = vmatprep.subr.bf16.mxu0 0
    %554 = vmatpush1.bf16.msra.mxu0 0
    %555 = vmatprep.subr.bf16.mxu0 0
    %556 = vmatpush1.bf16.msra.mxu0 0
    %557 = vmatprep.subr.bf16.mxu0 0
    %558 = vmatpush1.bf16.msra.mxu0 0
    %559 = vmatprep.subr.bf16.mxu0 0
    %560 = vmatpush1.bf16.msra.mxu0 0
    %561 = vmatprep.subr.bf16.mxu0 0
    %562 = vmatpush1.bf16.msra.mxu0 0
    %563 = vmatprep.subr.bf16.mxu0 0
    %564 = vmatpush1.bf16.msra.mxu0 0
    %565 = vmatprep.mubr.bf16.mxu0 0
    %566 = vmatmul.mubr.bf16.gmra.mrb[0].mxu0 %v503
    %v567 = vpop.f32.mrb[0].mxu0
    %v568 = vadd.f32 %v532, %v567
    %v569 = vpop.f32.mrb[0].mxu0
    %v570 = vpop.f32.mrb[0].mxu0
    %v571 = vpop.f32.mrb[0].mxu0
    %572 = vdwg.mxu0
    %vm573 = vcmp.lt.s32.totalorder %v52, 5
    %v574 = vsel %vm573, %v568, -1e+30
    %575 = vmax.xlane.f32.xlu0 %v574
    %v576 = vpop.xlane.xlu0 %575
    %v577 = vsub.f32 %v574, %v576
    %v578 = vmul.f32 %v577, 1.442695
    %v579 = vpow.pop %v578
    %580 = vadd.xlane.f32.xlu0 %v579
    %v581 = vpop.xlane.xlu0 %580
    %v582 = vrcp.pop %v581
    %v583 = vmul.f32 %v579, %v582
    %v584 = vlog2.pop %v581
    %v585 = vmul.f32 %v584, 0.6931472
    %v586 = vadd.f32 %v576, %v585
    %v587 = vsub.f32 %v574, %v586
    %vm588 = vcmp.eq.f32.partialorder %v53, %v59
    %v589 = vsel %vm588, %v587, 0.0
    %590 = vadd.xlane.f32.xlu0 %v589
    %v591 = vpop.xlane.xlu0 %590
    %v592 = vrot.slane %v591, 4
    %v593 = vadd.f32 %v591, %v592
    %v594 = vrot.slane %v593, 2
    %v595 = vadd.f32 %v593, %v594
    %v596 = vrot.slane %v595, 1
    %v597 = vadd.f32 %v595, %v596
    %v598 = vsub.f32 0.0, %v597
    %v599 = vmul.f32 %v598, 0.125
    %vm600 = vcmp.eq.s32.totalorder %v52, 5
    %v601 = vsel %vm600, %v599, %v583
    %602 = vst [vmem:[#allocation7] sm:$0xff] %v601
    // Predicated region
    $region30: #{tpu_custom_call.1} parent=1 // pred_check
      _
    $region31: #{tpu_custom_call.1} parent=1 // pred_check_branch
      %604 = sbr.rel (0) target = $region33
    $region32: #{tpu_custom_call.1} parent=1 // pred_region
      %s606 = ssub.s32 128, 128
      %607 = vsyncadd [#allocation4], %s606
      %s609 = sshll.u32 [#allocation7], 4
      %s610 = int_to_ptr.vmem [resolvable:$true] %s609
      %612 = dma.vmem_to_hbm [thread:$0]  %s610, 128, %s5, [#allocation4]
    $region33: #{tpu_custom_call.1} parent=1 // pred_fallthru
      _
    // Predicated region
    $region34: #{tpu_custom_call.1} parent=1 // pred_check
      _
    $region35: #{tpu_custom_call.1} parent=1 // pred_check_branch
      %614 = sbr.rel (0) target = $region37
    $region36: #{tpu_custom_call.1} parent=1 // pred_region
      %615 = dma.done [#allocation4], 128
    $region37: #{tpu_custom_call.1} parent=1 // pred_fallthru
      _
    %616 = vsyncpa [#allocation3], 1
    %617 = vsyncpa [#allocation6], 1
    %618 = vsyncpa [#allocation4], 1

</llo_original>
